<compile_context>
chip_gen: v7x
topology: tpu7x:2x2x1
jax: 0.10.0
libtpu: 0.0.40
codegen_flags: <defaults>
</compile_context>

<pallas_src>
import numpy as np
import jax
import jax.numpy as jnp
from jax.experimental import pallas as pl
from jax.experimental.pallas import tpu as pltpu

BN_EPS = 1e-5
LANE = 128
SUBLANE = 8
MAX_TM = 256                               # batch-tile rows (perf review: 256-512)
RESIDENT_VMEM_BUDGET = 48 * 1024 * 1024    # conservative for v7x's 64 MiB VMEM
COMPUTE_DTYPE = jnp.bfloat16               # weight storage / MXU input dtype


def _round_up(x, m):
    return (x + m - 1) // m * m


# ----------------------------- Pallas kernels ------------------------------- #

def _make_resident_kernel(num_layers, is_final_group):
    """All `num_layers` layers of a group unrolled in one grid step.

    grid = (batch_tiles,).  Weights/bias blocks use a constant index_map so
    they stay resident in VMEM (fetched from HBM once per kernel)."""

    def kernel(x_ref, w_ref, b_ref, o_ref):
        act = x_ref[...].astype(jnp.float32)
        for l in range(num_layers):
            y = jnp.dot(act.astype(COMPUTE_DTYPE), w_ref[l],
                        preferred_element_type=jnp.float32)
            y = y + b_ref[l]                        # f32 epilogue
            if is_final_group and l == num_layers - 1:
                o_ref[...] = jax.nn.sigmoid(y).astype(o_ref.dtype)
            else:
                act = jnp.maximum(y, 0.0)
        if not is_final_group:
            o_ref[...] = act.astype(o_ref.dtype)

    return kernel


def _make_streaming_kernel(num_layers, is_final_group):
    """Fallback when the group's weight stack does not fit VMEM.

    grid = (batch_tiles, num_layers); per-layer weight blocks stream in
    (auto double-buffered); activation carried in a VMEM scratch."""

    def kernel(x_ref, w_ref, b_ref, o_ref, act_ref):
        l = pl.program_id(1)
        last = num_layers - 1

        if num_layers > 1:
            @pl.when(l == 0)
            def _():
                act_ref[...] = x_ref[...].astype(jnp.float32)
            src = act_ref[...]
        else:
            src = x_ref[...].astype(jnp.float32)

        y = jnp.dot(src.astype(COMPUTE_DTYPE), w_ref[0],
                    preferred_element_type=jnp.float32)
        y = y + b_ref[0]

        if num_layers > 1:
            @pl.when(l != last)
            def _():
                act_ref[...] = jnp.maximum(y, 0.0)

        @pl.when(l == last)
        def _():
            if is_final_group:
                o_ref[...] = jax.nn.sigmoid(y).astype(o_ref.dtype)
            else:
                o_ref[...] = jnp.maximum(y, 0.0).astype(o_ref.dtype)

    return kernel


# ------------------------------ Wrappers ------------------------------------ #

def _run_group(act, w_stack, b_stack, din, dout, TM, is_final, force_streaming):
    """Run one group of layers.  act:(B_pad, din) -> (B_pad, dout)."""
    L = w_stack.shape[0]
    B_pad = act.shape[0]
    n_tiles = B_pad // TM
    wbytes = jnp.dtype(w_stack.dtype).itemsize

    # VMEM estimate for the resident path (count 2x for double-buffering).
    resident_est = (2 * L * din * dout * wbytes          # weight stack
                    + 2 * L * dout * 4                   # bias stack
                    + 2 * TM * din * 4                   # x blocks
                    + 2 * TM * dout * 4                  # out blocks
                    + TM * max(din, dout) * 4)           # live activation
    use_resident = (not force_streaming) and resident_est <= RESIDENT_VMEM_BUDGET

    if use_resident:
        vmem_limit = max(32 << 20, int(resident_est) + (4 << 20))
        out = pl.pallas_call(
            _make_resident_kernel(L, is_final),
            out_shape=jax.ShapeDtypeStruct((B_pad, dout), jnp.float32),
            grid_spec=pltpu.PrefetchScalarGridSpec(
                num_scalar_prefetch=0,
                grid=(n_tiles,),
                in_specs=[
                    pl.BlockSpec((TM, din), lambda m: (m, 0)),         # batch tile
                    pl.BlockSpec((L, din, dout), lambda m: (0, 0, 0)),  # resident W
                    pl.BlockSpec((L, 1, dout), lambda m: (0, 0, 0)),    # resident b
                ],
                out_specs=pl.BlockSpec((TM, dout), lambda m: (m, 0)),
            ),
            compiler_params=pltpu.CompilerParams(
                dimension_semantics=("parallel",),
                vmem_limit_bytes=vmem_limit),
        )(act, w_stack, b_stack)
    else:
        stream_est = (2 * din * dout * wbytes + 2 * dout * 4
                      + 2 * TM * din * 4 + 2 * TM * dout * 4
                      + TM * din * 4)
        vmem_limit = max(32 << 20, int(stream_est) + (4 << 20))
        out = pl.pallas_call(
            _make_streaming_kernel(L, is_final),
            out_shape=jax.ShapeDtypeStruct((B_pad, dout), jnp.float32),
            grid_spec=pltpu.PrefetchScalarGridSpec(
                num_scalar_prefetch=0,
                grid=(n_tiles, L),
                in_specs=[
                    pl.BlockSpec((TM, din), lambda m, l: (m, 0)),
                    pl.BlockSpec((1, din, dout), lambda m, l: (l, 0, 0)),
                    pl.BlockSpec((1, 1, dout), lambda m, l: (l, 0, 0)),
                ],
                out_specs=pl.BlockSpec((TM, dout), lambda m, l: (m, 0)),
                scratch_shapes=[pltpu.VMEM((TM, din), jnp.float32)],
            ),
            compiler_params=pltpu.CompilerParams(
                dimension_semantics=("parallel", "arbitrary"),
                vmem_limit_bytes=vmem_limit),
        )(act, w_stack, b_stack)
    return out


def large_dnn_forward(x, groups, force_streaming=False):
    """x:(B, input_size) -> (B, 1). `groups` from pad_and_group()."""
    B = x.shape[0]
    B8 = _round_up(B, SUBLANE)
    TM = min(MAX_TM, B8)
    # Guarantee >= 2 batch tiles (v7x megacore) when the batch is big enough.
    if B8 >= 2 * LANE and B8 // TM < 2:
        TM = LANE
    B_pad = _round_up(B8, TM)

    din0 = groups[0][2]
    act = jnp.pad(x.astype(jnp.float32),
                  ((0, B_pad - B), (0, din0 - x.shape[1])))

    for gi, (w_stack, b_stack, din, dout) in enumerate(groups):
        act = _run_group(act, w_stack, b_stack, din, dout, TM,
                         gi == len(groups) - 1, force_streaming)
    return act[:B, :1]   # real output width is 1 (lane-padded to 128 in-kernel)


# --------------------------- Parameter handling ----------------------------- #

def init_linear(key, in_f, out_f):
    """PyTorch nn.Linear default init (uniform +-1/sqrt(in)); W stored (in,out)."""
    kw, kb = jax.random.split(key)
    bound = 1.0 / np.sqrt(in_f)
    w = jax.random.uniform(kw, (in_f, out_f), jnp.float32, -bound, bound)
    b = jax.random.uniform(kb, (out_f,), jnp.float32, -bound, bound)
    return w, b


def init_bn(key, out_f):
    """Non-trivial BatchNorm1d eval-mode parameters (gamma, beta, mean, var)."""
    k1, k2, k3, k4 = jax.random.split(key, 4)
    gamma = jax.random.uniform(k1, (out_f,), jnp.float32, 0.8, 1.2)
    beta = jax.random.uniform(k2, (out_f,), jnp.float32, -0.1, 0.1)
    mean = jax.random.uniform(k3, (out_f,), jnp.float32, -0.1, 0.1)
    var = jax.random.uniform(k4, (out_f,), jnp.float32, 0.8, 1.2)
    return gamma, beta, mean, var


def build_params(key, input_size, fc1, fc2, fc3, nl1, nl2, nl3):
    keys = iter(jax.random.split(key, 10 + nl1 + nl2 + nl3))
    p = {}
    p["input"] = init_linear(next(keys), input_size, fc1)
    p["bn_input"] = init_bn(next(keys), fc1)
    p["hidden1"] = [init_linear(next(keys), fc1, fc1) for _ in range(nl1)]
    p["bn_hidden1"] = init_bn(next(keys), fc1)
    p["inter1"] = init_linear(next(keys), fc1, fc2)
    p["bn_inter1"] = init_bn(next(keys), fc2)
    p["hidden2"] = [init_linear(next(keys), fc2, fc2) for _ in range(nl2)]
    p["bn_hidden2"] = init_bn(next(keys), fc2)
    p["inter2"] = init_linear(next(keys), fc2, fc3)
    p["bn_inter2"] = init_bn(next(keys), fc3)
    p["hidden3"] = [init_linear(next(keys), fc3, fc3) for _ in range(nl3)]
    p["bn_hidden3"] = init_bn(next(keys), fc3)
    p["output"] = init_linear(next(keys), fc3, 1)
    return p


def fold_layers(p):
    """Flat list of (W_eff, b_eff) in forward order, eval-mode BN folded into
    the input side of the following Linear."""
    def bn_affine(bn):
        gamma, beta, mean, var = bn
        a = gamma * jax.lax.rsqrt(var + BN_EPS)
        return a, beta - mean * a

    seq = [(p["input"], p["bn_input"])]
    seq += [(wb, p["bn_hidden1"]) for wb in p["hidden1"]]
    seq += [(p["inter1"], p["bn_inter1"])]
    seq += [(wb, p["bn_hidden2"]) for wb in p["hidden2"]]
    seq += [(p["inter2"], p["bn_inter2"])]
    seq += [(wb, p["bn_hidden3"]) for wb in p["hidden3"]]
    seq += [(p["output"], None)]           # output layer: no BN / ReLU after it

    layers = []
    a_prev, c_prev = None, None
    for (w, b), bn in seq:
        if a_prev is not None:
            # (a*r + c) @ W + b  ==  r @ (a[:,None]*W) + (c @ W + b)
            b = c_prev @ w + b
            w = a_prev[:, None] * w
        layers.append((w, b))
        a_prev, c_prev = bn_affine(bn) if bn is not None else (None, None)
    return layers


def pad_and_group(layers, pad_to=LANE):
    """Pad each layer to lane-multiple widths and group consecutive layers with
    identical padded shapes (per-stage widths -> no global-max padding)."""
    groups = []
    for w, b in layers:
        din = _round_up(w.shape[0], pad_to)
        dout = _round_up(max(w.shape[1], 1), pad_to)
        wp = jnp.pad(w, ((0, din - w.shape[0]), (0, dout - w.shape[1])))
        bp = jnp.pad(b, (0, dout - b.shape[0]))
        if groups and groups[-1]["din"] == din and groups[-1]["dout"] == dout:
            groups[-1]["w"].append(wp)
            groups[-1]["b"].append(bp)
        else:
            groups.append({"din": din, "dout": dout, "w": [wp], "b": [bp]})

    packed = []
    for g in groups:
        w_stack = jnp.stack(g["w"]).astype(COMPUTE_DTYPE)       # (L, Din, Dout) bf16
        b_stack = jnp.stack([bb[None, :] for bb in g["b"]]).astype(jnp.float32)
        packed.append((w_stack, b_stack, g["din"], g["dout"]))
    return packed


# --------------------------- Pure-JAX reference ----------------------------- #

def _reference_forward(x, p):
    def layer(x, w, b, g, be, m, v):
        y = jnp.maximum(x @ w + b, 0.0)                        # relu(Linear(x))
        return (y - m) * jax.lax.rsqrt(v + BN_EPS) * g + be    # BatchNorm1d (eval)

    x = layer(x, *p["input"], *p["bn_input"])
    for wb in p["hidden1"]:
        x = layer(x, *wb, *p["bn_hidden1"])
    x = layer(x, *p["inter1"], *p["bn_inter1"])
    for wb in p["hidden2"]:
        x = layer(x, *wb, *p["bn_hidden2"])
    x = layer(x, *p["inter2"], *p["bn_inter2"])
    for wb in p["hidden3"]:
        x = layer(x, *wb, *p["bn_hidden3"])
    w, b = p["output"]
    return jax.nn.sigmoid(x @ w + b)


# -------------------------------- Main -------------------------------------- #

if __name__ == "__main__":
    # Small synthetic hyperparameters (stand-ins for the argparse args).
    # Unequal fc widths so per-stage grouping / rectangular blocks get exercised.
    input_size = 16
    fc1, fc2, fc3 = 256, 128, 64
    nl1, nl2, nl3 = 2, 2, 1
    batch = 512          # >= 2 batch tiles at TM=256 -> "parallel" axis is real

    key = jax.random.PRNGKey(0)
    kx, kp = jax.random.split(key)
    x = jax.random.normal(kx, (batch, input_size), jnp.float32)

    params = build_params(kp, input_size, fc1, fc2, fc3, nl1, nl2, nl3)
    groups = pad_and_group(fold_layers(params))

    ref = jax.block_until_ready(_reference_forward(x, params))

    # Resident-weights path (default).
    out = jax.block_until_ready(large_dnn_forward(x, groups))
    assert out.shape == (batch, 1), out.shape
    np.testing.assert_allclose(np.asarray(out), np.asarray(ref),
                               rtol=2e-2, atol=2e-2)

    # Streaming path (exercised so the large-weight fallback is also verified).
    out_s = jax.block_until_ready(large_dnn_forward(x, groups,
                                                    force_streaming=True))
    np.testing.assert_allclose(np.asarray(out_s), np.asarray(ref),
                               rtol=2e-2, atol=2e-2)

    print("KERNEL_OK")
</pallas_src>

<mosaic_0001>
module attributes {stable_mosaic.version = 11 : i64} {
  func.func @kernel(%arg0: i32, %arg1: memref<256x128xf32, #tpu.memory_space<vmem>>, %arg2: memref<1x128x256xbf16, #tpu.memory_space<vmem>>, %arg3: memref<1x1x256xf32, #tpu.memory_space<vmem>>, %arg4: memref<256x256xf32, #tpu.memory_space<vmem>>) attributes {dimension_semantics = [#tpu.dimension_semantics<parallel>], iteration_bounds = array<i64: 2>, scalar_prefetch = 0 : i64, scratch_operands = 0 : i64, tpu.core_type = #tpu.core_type<tc>, window_params = [{transform_indices = @transform_0, window_bounds = array<i64: 256, 128>}, {pipeline_mode = #tpu.pipeline_mode<synchronous>, transform_indices = @transform_1, window_bounds = array<i64: 1, 128, 256>}, {pipeline_mode = #tpu.pipeline_mode<synchronous>, transform_indices = @transform_2, window_bounds = array<i64: 1, 1, 256>}, {transform_indices = @transform_3, window_bounds = array<i64: 256, 256>}]} {
    %c0 = arith.constant 0 : index
    %c0_0 = arith.constant 0 : index
    %0 = vector.load %arg1[%c0, %c0_0] : memref<256x128xf32, #tpu.memory_space<vmem>>, vector<256x128xf32>
    %1 = arith.truncf %0 : vector<256x128xf32> to vector<256x128xbf16>
    %c0_1 = arith.constant 0 : index
    %c0_2 = arith.constant 0 : index
    %c0_3 = arith.constant 0 : index
    %2 = vector.load %arg2[%c0_1, %c0_2, %c0_3] : memref<1x128x256xbf16, #tpu.memory_space<vmem>>, vector<1x128x256xbf16>
    %3 = vector.shape_cast %2 : vector<1x128x256xbf16> to vector<128x256xbf16>
    %cst = arith.constant dense<0.000000e+00> : vector<256x256xf32>
    %4 = tpu.matmul %1, %3, %cst {dimension_numbers = #tpu.dot_dimension_numbers<[1], [0], [0], [1], [0, 0, 1, 1], [], []>} : vector<256x128xbf16>, vector<128x256xbf16>, vector<256x256xf32> -> vector<256x256xf32>
    %c0_4 = arith.constant 0 : index
    %c0_5 = arith.constant 0 : index
    %c0_6 = arith.constant 0 : index
    %5 = vector.load %arg3[%c0_4, %c0_5, %c0_6] : memref<1x1x256xf32, #tpu.memory_space<vmem>>, vector<1x1x256xf32>
    %6 = vector.shape_cast %5 : vector<1x1x256xf32> to vector<1x256xf32>
    %7 = vector.broadcast %6 : vector<1x256xf32> to vector<256x256xf32>
    %8 = arith.addf %4, %7 : vector<256x256xf32>
    %cst_7 = arith.constant 0.000000e+00 : f32
    %9 = vector.broadcast %cst_7 : f32 to vector<256x256xf32>
    %10 = arith.maximumf %8, %9 : vector<256x256xf32>
    %c0_8 = arith.constant 0 : index
    %c0_9 = arith.constant 0 : index
    %11 = vector.load %arg4[%c0_8, %c0_9] : memref<256x256xf32, #tpu.memory_space<vmem>>, vector<256x256xf32>
    tpu.vector_store %arg4[%c0_8, %c0_9], %10 {strides = array<i32>} : memref<256x256xf32, #tpu.memory_space<vmem>>, vector<256x256xf32>,
    return
  }
  func.func @transform_0(%arg0: i32) -> (i32, i32) {
    %c0_i32 = arith.constant 0 : i32
    %c0_i32_0 = arith.constant 0 : i32
    return %arg0, %c0_i32 : i32, i32
  }
  func.func @transform_1(%arg0: i32) -> (i32, i32, i32) {
    %c0_i32 = arith.constant 0 : i32
    %c0_i32_0 = arith.constant 0 : i32
    %c0_i32_1 = arith.constant 0 : i32
    %c0_i32_2 = arith.constant 0 : i32
    return %c0_i32, %c0_i32_0, %c0_i32_1 : i32, i32, i32
  }
  func.func @transform_2(%arg0: i32) -> (i32, i32, i32) {
    %c0_i32 = arith.constant 0 : i32
    %c0_i32_0 = arith.constant 0 : i32
    %c0_i32_1 = arith.constant 0 : i32
    %c0_i32_2 = arith.constant 0 : i32
    return %c0_i32, %c0_i32_0, %c0_i32_1 : i32, i32, i32
  }
  func.func @transform_3(%arg0: i32) -> (i32, i32) {
    %c0_i32 = arith.constant 0 : i32
    %c0_i32_0 = arith.constant 0 : i32
    return %arg0, %c0_i32 : i32, i32
  }
}

</mosaic_0001>

<llo_original>
// kernel: tpu_custom_call.1
$region0: #{tpu_custom_call.1}
  #allocation0 [shape = 'u32[]', space=smem, size = 0x4, offset = 0x4, fixed_abs, tag = 'smem constant byte address 0x4 - core index']
  #allocation1 [shape = 'u32[144,128]{1,0:T(1,128)}', space=vmem, size = 0x12000, scoped, tag = 'internal scratch']
  %s0 = inlined_call_operand.hbm [shape: f32[512,128], index: 0, kind: input, shape index: {}]
  %s1 = inlined_call_operand.hbm [shape: bf16[1,128,256], index: 1, kind: input, shape index: {}]
  %s2 = inlined_call_operand.vmem [shape: f32[1,1,256], index: 2, kind: input, shape index: {}]
  %s3 = inlined_call_operand.hbm [shape: f32[512,256], index: 3, kind: output, shape index: {}]
  %s4 = sld [smem:[#allocation0]]
  $region53: #{tpu_custom_call.1} parent=0
    _
  %s6 = ssub.s32 1, %s4
  %s7 = scalar_select 0, %s6, %s4
  $region1: #{tpu_custom_call.1} parent=0
    #allocation2 [shape = 'u8[262144]{0}', space=vmem, size = 0x40000, scoped, tag = 'input window, operand 0']
    #allocation3 [shape = 's32[2]{0}', space=sflag, size = 0x8, scoped, tag = 'scoped memory for tpu_custom_call.1']
    #allocation4 [shape = 's32[2]{0}', space=sflag, size = 0x8, scoped, tag = 'scoped memory for tpu_custom_call.1']
    #allocation5 [shape = 'u8[65536]{0}', space=vmem, size = 0x10000, scoped, tag = 'input window, operand 1, single buffered']
    #allocation6 [shape = 's32[1]{0}', space=sflag, size = 0x4, scoped, tag = 'scoped memory for tpu_custom_call.1']
    #allocation7 [shape = 'u8[524288]{0}', space=vmem, size = 0x80000, scoped, tag = 'output window, operand 0']
    %8 = vsyncpa [#allocation3], 0
    %s9 = scalar_lea.sflag [#allocation3], 1
    %10 = vsyncpa %s9, 0
    %11 = vsyncpa [#allocation6], 0
    %12 = vsyncpa [#allocation4], 0
    %s13 = scalar_lea.sflag [#allocation4], 1
    %14 = vsyncpa %s13, 0
    loop: start=0, step=1, limit=4
    $region2: #{tpu_custom_call.1} parent=1 // loop_pre_header
      _
    $region3: #{tpu_custom_call.1} parent=1 // loop_header
      %s16 = sphi 0, %s20
      %p17 = scmp.ge.s32.totalorder %s16, 4
      %s26 = sphi 0, %s28
      %s29 = sphi 0, %s26
      %s30 = sphi 0, %s29
      %s46 = sphi 0, %s30
      %s50 = sphi 0, %s50
      %s52 = sphi 0, %s50
      %s53 = sphi 0, %s52
      %s67 = sphi 0, %s53
      %s71 = sphi 0, %s71
      %s73 = sphi 0, %s71
      %s74 = sphi 0, %s73
      %s88 = sphi 0, %s74
      %s94 = sphi 0, %s96
      %s97 = sphi 0, %s94
      %s98 = sphi 0, %s97
      %s114 = sphi 0, %s98
    $region4: #{tpu_custom_call.1} parent=1 // loop_header_branch
      %19 = sbr.rel (%p17) target = $region8
    $region5: #{tpu_custom_call.1} parent=1 // loop_body
      %s21 = ssub.s32 %s16, 1
      %s22 = ssub.s32 %s16, 2
      %s23 = sadd.s32 %s16, 1
      %s24 = ssub.s32 %s16, %s23
      %p25 = scmp.eq.s32.totalorder %s24, 0
      %s27 = sadd.s32 %s26, 1
      %s28 = scalar_select %p25, %s26, %s27
      %p31 = pneg %p25
      %p32 = scmp.eq.s32.totalorder %s16, 1
      %p33 = por %p31, %p32
      %p34 = scmp.ne.s32.totalorder %s26, %s29
      %p35 = scmp.eq.s32.totalorder %s16, 0
      %p36 = por %p34, %p35
      %p37 = scmp.ne.s32.totalorder %s26, %s29
      %p38 = scmp.eq.s32.totalorder %s21, 1
      %p39 = por %p37, %p38
      %p40 = scmp.ne.s32.totalorder %s29, %s30
      %p41 = scmp.eq.s32.totalorder %s21, 0
      %p42 = por %p40, %p41
      %p43 = scmp.ne.s32.totalorder %s29, %s30
      %p44 = scmp.eq.s32.totalorder %s22, 1
      %p45 = por %p43, %p44
      %p47 = scmp.ne.s32.totalorder %s30, %s46
      %p48 = scmp.eq.s32.totalorder %s22, 0
      %p49 = por %p47, %p48
      %s51 = sadd.s32 %s50, 1
      %p54 = scmp.eq.s32.totalorder %s16, 1
      %p55 = scmp.ne.s32.totalorder %s50, %s52
      %p56 = scmp.eq.s32.totalorder %s16, 0
      %p57 = por %p55, %p56
      %p58 = scmp.ne.s32.totalorder %s50, %s52
      %p59 = scmp.eq.s32.totalorder %s21, 1
      %p60 = por %p58, %p59
      %p61 = scmp.ne.s32.totalorder %s52, %s53
      %p62 = scmp.eq.s32.totalorder %s21, 0
      %p63 = por %p61, %p62
      %p64 = scmp.ne.s32.totalorder %s52, %s53
      %p65 = scmp.eq.s32.totalorder %s22, 1
      %p66 = por %p64, %p65
      %p68 = scmp.ne.s32.totalorder %s53, %s67
      %p69 = scmp.eq.s32.totalorder %s22, 0
      %p70 = por %p68, %p69
      %s72 = sadd.s32 %s71, 1
      %p75 = scmp.eq.s32.totalorder %s16, 1
      %p76 = scmp.ne.s32.totalorder %s71, %s73
      %p77 = scmp.eq.s32.totalorder %s16, 0
      %p78 = por %p76, %p77
      %p79 = scmp.ne.s32.totalorder %s71, %s73
      %p80 = scmp.eq.s32.totalorder %s21, 1
      %p81 = por %p79, %p80
      %p82 = scmp.ne.s32.totalorder %s73, %s74
      %p83 = scmp.eq.s32.totalorder %s21, 0
      %p84 = por %p82, %p83
      %p85 = scmp.ne.s32.totalorder %s73, %s74
      %p86 = scmp.eq.s32.totalorder %s22, 1
      %p87 = por %p85, %p86
      %p89 = scmp.ne.s32.totalorder %s74, %s88
      %p90 = scmp.eq.s32.totalorder %s22, 0
      %p91 = por %p89, %p90
      %s92 = ssub.s32 %s16, %s23
      %p93 = scmp.eq.s32.totalorder %s92, 0
      %s95 = sadd.s32 %s94, 1
      %s96 = scalar_select %p93, %s94, %s95
      %p99 = pneg %p93
      %p100 = scmp.eq.s32.totalorder %s16, 1
      %p101 = por %p99, %p100
      %p102 = scmp.ne.s32.totalorder %s94, %s97
      %p103 = scmp.eq.s32.totalorder %s16, 0
      %p104 = por %p102, %p103
      %p105 = scmp.ne.s32.totalorder %s94, %s97
      %p106 = scmp.eq.s32.totalorder %s21, 1
      %p107 = por %p105, %p106
      %p108 = scmp.ne.s32.totalorder %s97, %s98
      %p109 = scmp.eq.s32.totalorder %s21, 0
      %p110 = por %p108, %p109
      %p111 = scmp.ne.s32.totalorder %s97, %s98
      %p112 = scmp.eq.s32.totalorder %s22, 1
      %p113 = por %p111, %p112
      %p115 = scmp.ne.s32.totalorder %s98, %s114
      %p116 = scmp.eq.s32.totalorder %s22, 0
      %p117 = por %p115, %p116
      %p118 = scmp.le.s32.totalorder 1, %s16
      %p119 = scmp.lt.s32.totalorder %s16, 3
      %p120 = pnand %p118, %p119
      %p121 = pneg %p120
      // Predicated region
      $region9: #{tpu_custom_call.1} parent=5 // pred_check
        _
      $region10: #{tpu_custom_call.1} parent=5 // pred_check_branch
        %123 = sbr.rel (%p120) target = $region12
      $region11: #{tpu_custom_call.1} parent=5 // pred_region
        %s124 = ssub.s32 %s16, 1
        // Predicated region
        $region13: #{tpu_custom_call.1} parent=11 // pred_check
          %p125 = pneg %p63
        $region14: #{tpu_custom_call.1} parent=11 // pred_check_branch
          %127 = sbr.rel (%p125) target = $region16
        $region15: #{tpu_custom_call.1} parent=11 // pred_region
          %s129 = ssub.s32 2048, 2048
          %130 = vsyncadd [#allocation6], %s129
          %s131 = sshll.u32 [#allocation5], 4
          %s132 = int_to_ptr.vmem [resolvable:$true] %s131
          %137 = dma.hbm_to_vmem [thread:$0]  %s1, 2048, %s132, [#allocation6], 128, 128, 8
        $region16: #{tpu_custom_call.1} parent=11 // pred_fallthru
          _
        // Predicated region
        $region17: #{tpu_custom_call.1} parent=11 // pred_check
          %p138 = pneg %p84
        $region18: #{tpu_custom_call.1} parent=11 // pred_check_branch
          %140 = sbr.rel (%p138) target = $region20
        $region19: #{tpu_custom_call.1} parent=11 // pred_region
          _
        $region20: #{tpu_custom_call.1} parent=11 // pred_fallthru
          _
      $region12: #{tpu_custom_call.1} parent=5 // pred_fallthru
        _
      %p141 = scmp.lt.s32.totalorder %s16, 2
      // Predicated region
      $region21: #{tpu_custom_call.1} parent=5 // pred_check
        %p142 = pneg %p141
      $region22: #{tpu_custom_call.1} parent=5 // pred_check_branch
        %144 = sbr.rel (%p142) target = $region24
      $region23: #{tpu_custom_call.1} parent=5 // pred_region
        // Predicated region
        $region25: #{tpu_custom_call.1} parent=23 // pred_check
          %p145 = pneg %p36
        $region26: #{tpu_custom_call.1} parent=23 // pred_check_branch
          %147 = sbr.rel (%p145) target = $region28
        $region27: #{tpu_custom_call.1} parent=23 // pred_region
          %s148 = sand.u32 %s26, 1
          %s149 = scalar_lea.sflag [#allocation3], %s148
          %s150 = sand.u32 %s26, 1
          %s151 = smul.addr %s150, 256
          %s152 = scalar_lea.vmem [#allocation2], %s151
          %s153 = smul.u32 32, %s16
          %s155 = ssub.s32 4096, 4096
          %156 = vsyncadd %s149, %s155
          %s157 = smul.addr %s153, 128
          %s158 = scalar_lea.hbm %s0, %s157
          %s159 = sshll.u32 %s152, 4
          %s160 = int_to_ptr.vmem [resolvable:$true] %s159
          %165 = dma.hbm_to_vmem [thread:$0]  %s158, 4096, %s160, %s149, 128, 128, 8
        $region28: #{tpu_custom_call.1} parent=23 // pred_fallthru
          _
      $region24: #{tpu_custom_call.1} parent=5 // pred_fallthru
        _
      %p166 = scmp.le.s32.totalorder 1, %s16
      %p167 = scmp.lt.s32.totalorder %s16, 3
      %p168 = pnand %p166, %p167
      %p169 = pneg %p168
      // Predicated region
      $region29: #{tpu_custom_call.1} parent=5 // pred_check
        _
      $region30: #{tpu_custom_call.1} parent=5 // pred_check_branch
        %171 = sbr.rel (%p168) target = $region32
      $region31: #{tpu_custom_call.1} parent=5 // pred_region
        %s172 = ssub.s32 %s16, 1
        %s173 = sand.u32 %s29, 1
        %s174 = scalar_lea.sflag [#allocation3], %s173
        %s175 = sand.u32 %s29, 1
        %s176 = smul.addr %s175, 256
        %s177 = scalar_lea.vmem [#allocation2], %s176
        // Predicated region
        $region33: #{tpu_custom_call.1} parent=31 // pred_check
          %p178 = pneg %p42
        $region34: #{tpu_custom_call.1} parent=31 // pred_check_branch
          %180 = sbr.rel (%p178) target = $region36
        $region35: #{tpu_custom_call.1} parent=31 // pred_region
          %181 = dma.done %s174, 4096
        $region36: #{tpu_custom_call.1} parent=31 // pred_fallthru
          _
        // Predicated region
        $region37: #{tpu_custom_call.1} parent=31 // pred_check
          %p182 = pneg %p63
        $region38: #{tpu_custom_call.1} parent=31 // pred_check_branch
          %184 = sbr.rel (%p182) target = $region40
        $region39: #{tpu_custom_call.1} parent=31 // pred_region
          %185 = dma.done [#allocation6], 2048
        $region40: #{tpu_custom_call.1} parent=31 // pred_fallthru
          _
        %s186 = sand.u32 %s29, 1
        %s187 = scalar_lea.sflag [#allocation3], %s186
        %s188 = sand.u32 %s29, 1
        %s189 = smul.addr %s188, 256
        %s190 = scalar_lea.vmem [#allocation2], %s189
        %p191 = pneg %p42
        %p192 = pneg %p39
        %p193 = pneg %p63
        %p194 = pneg %p60
        %p195 = pneg %p84
        %p196 = pneg %p81
        %p197 = pneg %p110
        %p198 = pneg %p107
        %s199 = sand.u32 %s97, 1
        %s200 = scalar_lea.sflag [#allocation4], %s199
        %s201 = sand.u32 %s97, 1
        %s202 = smul.addr %s201, 512
        %s203 = scalar_lea.vmem [#allocation7], %s202
        %s204 = smul.u32 32, %s21
        %s205 = smul.u32 32, %s21
        %v207 = vld [vmem:[%s177] sm:$0xff]
        %v208 = vld [vmem:[%s177 + $0x8] sm:$0xff]
        %v209 = vld [vmem:[%s177 + $0x10] sm:$0xff]
        %v210 = vld [vmem:[%s177 + $0x18] sm:$0xff]
        %v211 = vld [vmem:[%s177 + $0x20] sm:$0xff]
        %v212 = vld [vmem:[%s177 + $0x28] sm:$0xff]
        %v213 = vld [vmem:[%s177 + $0x30] sm:$0xff]
        %v214 = vld [vmem:[%s177 + $0x38] sm:$0xff]
        %v215 = vld [vmem:[%s177 + $0x40] sm:$0xff]
        %v216 = vld [vmem:[%s177 + $0x48] sm:$0xff]
        %v217 = vld [vmem:[%s177 + $0x50] sm:$0xff]
        %v218 = vld [vmem:[%s177 + $0x58] sm:$0xff]
        %v219 = vld [vmem:[%s177 + $0x60] sm:$0xff]
        %v220 = vld [vmem:[%s177 + $0x68] sm:$0xff]
        %v221 = vld [vmem:[%s177 + $0x70] sm:$0xff]
        %v222 = vld [vmem:[%s177 + $0x78] sm:$0xff]
        %v223 = vld [vmem:[%s177 + $0x80] sm:$0xff]
        %v224 = vld [vmem:[%s177 + $0x88] sm:$0xff]
        %v225 = vld [vmem:[%s177 + $0x90] sm:$0xff]
        %v226 = vld [vmem:[%s177 + $0x98] sm:$0xff]
        %v227 = vld [vmem:[%s177 + $0xa0] sm:$0xff]
        %v228 = vld [vmem:[%s177 + $0xa8] sm:$0xff]
        %v229 = vld [vmem:[%s177 + $0xb0] sm:$0xff]
        %v230 = vld [vmem:[%s177 + $0xb8] sm:$0xff]
        %v231 = vld [vmem:[%s177 + $0xc0] sm:$0xff]
        %v232 = vld [vmem:[%s177 + $0xc8] sm:$0xff]
        %v233 = vld [vmem:[%s177 + $0xd0] sm:$0xff]
        %v234 = vld [vmem:[%s177 + $0xd8] sm:$0xff]
        %v235 = vld [vmem:[%s177 + $0xe0] sm:$0xff]
        %v236 = vld [vmem:[%s177 + $0xe8] sm:$0xff]
        %v237 = vld [vmem:[%s177 + $0xf0] sm:$0xff]
        %v238 = vld [vmem:[%s177 + $0xf8] sm:$0xff]
        %v239 = vpack.c.bf16 %v208, %v207
        %v240 = vpack.c.bf16 %v210, %v209
        %v241 = vpack.c.bf16 %v212, %v211
        %v242 = vpack.c.bf16 %v214, %v213
        %v243 = vpack.c.bf16 %v216, %v215
        %v244 = vpack.c.bf16 %v218, %v217
        %v245 = vpack.c.bf16 %v220, %v219
        %v246 = vpack.c.bf16 %v222, %v221
        %v247 = vpack.c.bf16 %v224, %v223
        %v248 = vpack.c.bf16 %v226, %v225
        %v249 = vpack.c.bf16 %v228, %v227
        %v250 = vpack.c.bf16 %v230, %v229
        %v251 = vpack.c.bf16 %v232, %v231
        %v252 = vpack.c.bf16 %v234, %v233
        %v253 = vpack.c.bf16 %v236, %v235
        %v254 = vpack.c.bf16 %v238, %v237
        %v255 = vld [vmem:[#allocation5] sm:$0xff]
        %v256 = vld [vmem:[#allocation5 + $0x8] sm:$0xff]
        %v257 = vld [vmem:[#allocation5 + $0x10] sm:$0xff]
        %v258 = vld [vmem:[#allocation5 + $0x18] sm:$0xff]
        %v259 = vld [vmem:[#allocation5 + $0x20] sm:$0xff]
        %v260 = vld [vmem:[#allocation5 + $0x28] sm:$0xff]
        %v261 = vld [vmem:[#allocation5 + $0x30] sm:$0xff]
        %v262 = vld [vmem:[#allocation5 + $0x38] sm:$0xff]
        %v263 = vld [vmem:[#allocation5 + $0x40] sm:$0xff]
        %v264 = vld [vmem:[#allocation5 + $0x48] sm:$0xff]
        %v265 = vld [vmem:[#allocation5 + $0x50] sm:$0xff]
        %v266 = vld [vmem:[#allocation5 + $0x58] sm:$0xff]
        %v267 = vld [vmem:[#allocation5 + $0x60] sm:$0xff]
        %v268 = vld [vmem:[#allocation5 + $0x68] sm:$0xff]
        %v269 = vld [vmem:[#allocation5 + $0x70] sm:$0xff]
        %v270 = vld [vmem:[#allocation5 + $0x78] sm:$0xff]
        %v271 = vld [vmem:[%s2] sm:$0x3]
        %v273 = vlaneseq
        %v274 = vshrl.u32 %v273, 7
        %v275 = vsub.s32 0, %v274
        %v276 = vrot.slane %v271, %v275
        %v277 = vlaneseq
        %v278 = vshrl.u32 %v277, 7
        %v279 = vsub.s32 1, %v278
        %v280 = vrot.slane %v271, %v279
        %v299 = vunpack.c.l.b16 %v255
        %v300 = vunpack.c.h.b16 %v255
        %v301 = vunpack.c.l.b16 %v256
        %v302 = vunpack.c.h.b16 %v256
        %v303 = vunpack.c.l.b16 %v257
        %v304 = vunpack.c.h.b16 %v257
        %v305 = vunpack.c.l.b16 %v258
        %v306 = vunpack.c.h.b16 %v258
        %v307 = vunpack.c.l.b16 %v259
        %v308 = vunpack.c.h.b16 %v259
        %v309 = vunpack.c.l.b16 %v260
        %v310 = vunpack.c.h.b16 %v260
        %v311 = vunpack.c.l.b16 %v261
        %v312 = vunpack.c.h.b16 %v261
        %v313 = vunpack.c.l.b16 %v262
        %v314 = vunpack.c.h.b16 %v262
        %v315 = vunpack.c.l.b16 %v263
        %v316 = vunpack.c.h.b16 %v263
        %v317 = vunpack.c.l.b16 %v264
        %v318 = vunpack.c.h.b16 %v264
        %v319 = vunpack.c.l.b16 %v265
        %v320 = vunpack.c.h.b16 %v265
        %v321 = vunpack.c.l.b16 %v266
        %v322 = vunpack.c.h.b16 %v266
        %v323 = vunpack.c.l.b16 %v267
        %v324 = vunpack.c.h.b16 %v267
        %v325 = vunpack.c.l.b16 %v268
        %v326 = vunpack.c.h.b16 %v268
        %v327 = vunpack.c.l.b16 %v269
        %v328 = vunpack.c.h.b16 %v269
        %v329 = vunpack.c.l.b16 %v270
        %v330 = vunpack.c.h.b16 %v270
        %v331 = vpack.c.b16 %v301, %v299
        %v332 = vpack.c.b16 %v302, %v300
        %v333 = vpack.c.b16 %v305, %v303
        %v334 = vpack.c.b16 %v306, %v304
        %v335 = vpack.c.b16 %v309, %v307
        %v336 = vpack.c.b16 %v310, %v308
        %v337 = vpack.c.b16 %v313, %v311
        %v338 = vpack.c.b16 %v314, %v312
        %v339 = vpack.c.b16 %v317, %v315
        %v340 = vpack.c.b16 %v318, %v316
        %v341 = vpack.c.b16 %v321, %v319
        %v342 = vpack.c.b16 %v322, %v320
        %v343 = vpack.c.b16 %v325, %v323
        %v344 = vpack.c.b16 %v326, %v324
        %v345 = vpack.c.b16 %v329, %v327
        %v346 = vpack.c.b16 %v330, %v328
        %363 = vmatprep.subr.bf16.mxu0 %v332
        %364 = vmatpush1.bf16.msra.mxu0 %v331
        %365 = vmatprep.subr.bf16.mxu0 %v334
        %366 = vmatpush1.bf16.msra.mxu0 %v333
        %367 = vmatprep.subr.bf16.mxu0 %v336
        %368 = vmatpush1.bf16.msra.mxu0 %v335
        %369 = vmatprep.subr.bf16.mxu0 %v338
        %370 = vmatpush1.bf16.msra.mxu0 %v337
        %371 = vmatprep.subr.bf16.mxu0 %v340
        %372 = vmatpush1.bf16.msra.mxu0 %v339
        %373 = vmatprep.subr.bf16.mxu0 %v342
        %374 = vmatpush1.bf16.msra.mxu0 %v341
        %375 = vmatprep.subr.bf16.mxu0 %v344
        %376 = vmatpush1.bf16.msra.mxu0 %v343
        %377 = vmatprep.subr.bf16.mxu0 %v346
        %378 = vmatpush1.bf16.msra.mxu0 %v345
        %379 = vmatprep.subr.bf16.mxu0 0
        %380 = vmatpush1.bf16.msra.mxu0 0
        %381 = vmatprep.subr.bf16.mxu0 0
        %382 = vmatpush1.bf16.msra.mxu0 0
        %383 = vmatprep.subr.bf16.mxu0 0
        %384 = vmatpush1.bf16.msra.mxu0 0
        %385 = vmatprep.subr.bf16.mxu0 0
        %386 = vmatpush1.bf16.msra.mxu0 0
        %387 = vmatprep.subr.bf16.mxu0 0
        %388 = vmatpush1.bf16.msra.mxu0 0
        %389 = vmatprep.subr.bf16.mxu0 0
        %390 = vmatpush1.bf16.msra.mxu0 0
        %391 = vmatprep.subr.bf16.mxu0 0
        %392 = vmatpush1.bf16.msra.mxu0 0
        %393 = vmatprep.subr.bf16.mxu0 0
        %394 = vmatpush1.bf16.msra.mxu0 0
        %395 = vmatprep.mubr.bf16.mxu0 0
        %396 = vmatmul.mubr.bf16.gmra.mrb[0].mxu0 %v239
        %v397 = vpop.f32.mrb[0].mxu0
        %v398 = vadd.f32 %v276, %v397
        %v399 = vpop.f32.mrb[0].mxu0
        %v400 = vadd.f32 %v280, %v399
        %v401 = vpop.f32.mrb[0].mxu0
        %v402 = vadd.f32 %v276, %v401
        %v403 = vpop.f32.mrb[0].mxu0
        %v404 = vadd.f32 %v280, %v403
        %405 = vmatprep.mubr.bf16.mxu0 0
        %406 = vmatmul.mubr.bf16.gmra.mrb[0].mxu0 %v240
        %v407 = vpop.f32.mrb[0].mxu0
        %v408 = vadd.f32 %v276, %v407
        %v409 = vpop.f32.mrb[0].mxu0
        %v410 = vadd.f32 %v280, %v409
        %v411 = vpop.f32.mrb[0].mxu0
        %v412 = vadd.f32 %v276, %v411
        %v413 = vpop.f32.mrb[0].mxu0
        %v414 = vadd.f32 %v280, %v413
        %415 = vmatprep.mubr.bf16.mxu0 0
        %416 = vmatmul.mubr.bf16.gmra.mrb[0].mxu0 %v241
        %v417 = vpop.f32.mrb[0].mxu0
        %v418 = vadd.f32 %v276, %v417
        %v419 = vpop.f32.mrb[0].mxu0
        %v420 = vadd.f32 %v280, %v419
        %v421 = vpop.f32.mrb[0].mxu0
        %v422 = vadd.f32 %v276, %v421
        %v423 = vpop.f32.mrb[0].mxu0
        %v424 = vadd.f32 %v280, %v423
        %425 = vmatprep.mubr.bf16.mxu0 0
        %426 = vmatmul.mubr.bf16.gmra.mrb[0].mxu0 %v242
        %v427 = vpop.f32.mrb[0].mxu0
        %v428 = vadd.f32 %v276, %v427
        %v429 = vpop.f32.mrb[0].mxu0
        %v430 = vadd.f32 %v280, %v429
        %v431 = vpop.f32.mrb[0].mxu0
        %v432 = vadd.f32 %v276, %v431
        %v433 = vpop.f32.mrb[0].mxu0
        %v434 = vadd.f32 %v280, %v433
        %435 = vmatprep.mubr.bf16.mxu0 0
        %436 = vmatmul.mubr.bf16.gmra.mrb[0].mxu0 %v243
        %v437 = vpop.f32.mrb[0].mxu0
        %v438 = vadd.f32 %v276, %v437
        %v439 = vpop.f32.mrb[0].mxu0
        %v440 = vadd.f32 %v280, %v439
        %v441 = vpop.f32.mrb[0].mxu0
        %v442 = vadd.f32 %v276, %v441
        %v443 = vpop.f32.mrb[0].mxu0
        %v444 = vadd.f32 %v280, %v443
        %445 = vmatprep.mubr.bf16.mxu0 0
        %446 = vmatmul.mubr.bf16.gmra.mrb[0].mxu0 %v244
        %v447 = vpop.f32.mrb[0].mxu0
        %v448 = vadd.f32 %v276, %v447
        %v449 = vpop.f32.mrb[0].mxu0
        %v450 = vadd.f32 %v280, %v449
        %v451 = vpop.f32.mrb[0].mxu0
        %v452 = vadd.f32 %v276, %v451
        %v453 = vpop.f32.mrb[0].mxu0
        %v454 = vadd.f32 %v280, %v453
        %455 = vmatprep.mubr.bf16.mxu0 0
        %456 = vmatmul.mubr.bf16.gmra.mrb[0].mxu0 %v245
        %v457 = vpop.f32.mrb[0].mxu0
        %v458 = vadd.f32 %v276, %v457
        %v459 = vpop.f32.mrb[0].mxu0
        %v460 = vadd.f32 %v280, %v459
        %v461 = vpop.f32.mrb[0].mxu0
        %v462 = vadd.f32 %v276, %v461
        %v463 = vpop.f32.mrb[0].mxu0
        %v464 = vadd.f32 %v280, %v463
        %465 = vmatprep.mubr.bf16.mxu0 0
        %466 = vmatmul.mubr.bf16.gmra.mrb[0].mxu0 %v246
        %v467 = vpop.f32.mrb[0].mxu0
        %v468 = vadd.f32 %v276, %v467
        %v469 = vpop.f32.mrb[0].mxu0
        %v470 = vadd.f32 %v280, %v469
        %v471 = vpop.f32.mrb[0].mxu0
        %v472 = vadd.f32 %v276, %v471
        %v473 = vpop.f32.mrb[0].mxu0
        %v474 = vadd.f32 %v280, %v473
        %475 = vmatprep.mubr.bf16.mxu0 0
        %476 = vmatmul.mubr.bf16.gmra.mrb[0].mxu0 %v247
        %v477 = vpop.f32.mrb[0].mxu0
        %v478 = vadd.f32 %v276, %v477
        %v479 = vpop.f32.mrb[0].mxu0
        %v480 = vadd.f32 %v280, %v479
        %v481 = vpop.f32.mrb[0].mxu0
        %v482 = vadd.f32 %v276, %v481
        %v483 = vpop.f32.mrb[0].mxu0
        %v484 = vadd.f32 %v280, %v483
        %485 = vmatprep.mubr.bf16.mxu0 0
        %486 = vmatmul.mubr.bf16.gmra.mrb[0].mxu0 %v248
        %v487 = vpop.f32.mrb[0].mxu0
        %v488 = vadd.f32 %v276, %v487
        %v489 = vpop.f32.mrb[0].mxu0
        %v490 = vadd.f32 %v280, %v489
        %v491 = vpop.f32.mrb[0].mxu0
        %v492 = vadd.f32 %v276, %v491
        %v493 = vpop.f32.mrb[0].mxu0
        %v494 = vadd.f32 %v280, %v493
        %495 = vmatprep.mubr.bf16.mxu0 0
        %496 = vmatmul.mubr.bf16.gmra.mrb[0].mxu0 %v249
        %v497 = vpop.f32.mrb[0].mxu0
        %v498 = vadd.f32 %v276, %v497
        %v499 = vpop.f32.mrb[0].mxu0
        %v500 = vadd.f32 %v280, %v499
        %v501 = vpop.f32.mrb[0].mxu0
        %v502 = vadd.f32 %v276, %v501
        %v503 = vpop.f32.mrb[0].mxu0
        %v504 = vadd.f32 %v280, %v503
        %505 = vmatprep.mubr.bf16.mxu0 0
        %506 = vmatmul.mubr.bf16.gmra.mrb[0].mxu0 %v250
        %v507 = vpop.f32.mrb[0].mxu0
        %v508 = vadd.f32 %v276, %v507
        %v509 = vpop.f32.mrb[0].mxu0
        %v510 = vadd.f32 %v280, %v509
        %v511 = vpop.f32.mrb[0].mxu0
        %v512 = vadd.f32 %v276, %v511
        %v513 = vpop.f32.mrb[0].mxu0
        %v514 = vadd.f32 %v280, %v513
        %515 = vmatprep.mubr.bf16.mxu0 0
        %516 = vmatmul.mubr.bf16.gmra.mrb[0].mxu0 %v251
        %v517 = vpop.f32.mrb[0].mxu0
        %v518 = vadd.f32 %v276, %v517
        %v519 = vpop.f32.mrb[0].mxu0
        %v520 = vadd.f32 %v280, %v519
        %v521 = vpop.f32.mrb[0].mxu0
        %v522 = vadd.f32 %v276, %v521
        %v523 = vpop.f32.mrb[0].mxu0
        %v524 = vadd.f32 %v280, %v523
        %525 = vmatprep.mubr.bf16.mxu0 0
        %526 = vmatmul.mubr.bf16.gmra.mrb[0].mxu0 %v252
        %v527 = vpop.f32.mrb[0].mxu0
        %v528 = vadd.f32 %v276, %v527
        %v529 = vpop.f32.mrb[0].mxu0
        %v530 = vadd.f32 %v280, %v529
        %v531 = vpop.f32.mrb[0].mxu0
        %v532 = vadd.f32 %v276, %v531
        %v533 = vpop.f32.mrb[0].mxu0
        %v534 = vadd.f32 %v280, %v533
        %535 = vmatprep.mubr.bf16.mxu0 0
        %536 = vmatmul.mubr.bf16.gmra.mrb[0].mxu0 %v253
        %v537 = vpop.f32.mrb[0].mxu0
        %v538 = vadd.f32 %v276, %v537
        %v539 = vpop.f32.mrb[0].mxu0
        %v540 = vadd.f32 %v280, %v539
        %v541 = vpop.f32.mrb[0].mxu0
        %v542 = vadd.f32 %v276, %v541
        %v543 = vpop.f32.mrb[0].mxu0
        %v544 = vadd.f32 %v280, %v543
        %545 = vmatprep.mubr.bf16.mxu0 0
        %546 = vmatmul.mubr.bf16.gmra.mrb[0].mxu0 %v254
        %v547 = vpop.f32.mrb[0].mxu0
        %v548 = vadd.f32 %v276, %v547
        %v549 = vpop.f32.mrb[0].mxu0
        %v550 = vadd.f32 %v280, %v549
        %v551 = vpop.f32.mrb[0].mxu0
        %v552 = vadd.f32 %v276, %v551
        %v553 = vpop.f32.mrb[0].mxu0
        %v554 = vadd.f32 %v280, %v553
        %555 = vdwg.mxu0
        %v556 = vmax.f32 %v398, 0.0
        %v557 = vmax.f32 %v400, 0.0
        %v558 = vmax.f32 %v402, 0.0
        %v559 = vmax.f32 %v404, 0.0
        %v560 = vmax.f32 %v408, 0.0
        %v561 = vmax.f32 %v410, 0.0
        %v562 = vmax.f32 %v412, 0.0
        %v563 = vmax.f32 %v414, 0.0
        %v564 = vmax.f32 %v418, 0.0
        %v565 = vmax.f32 %v420, 0.0
        %v566 = vmax.f32 %v422, 0.0
        %v567 = vmax.f32 %v424, 0.0
        %v568 = vmax.f32 %v428, 0.0
        %v569 = vmax.f32 %v430, 0.0
        %v570 = vmax.f32 %v432, 0.0
        %v571 = vmax.f32 %v434, 0.0
        %v572 = vmax.f32 %v438, 0.0
        %v573 = vmax.f32 %v440, 0.0
        %v574 = vmax.f32 %v442, 0.0
        %v575 = vmax.f32 %v444, 0.0
        %v576 = vmax.f32 %v448, 0.0
        %v577 = vmax.f32 %v450, 0.0
        %v578 = vmax.f32 %v452, 0.0
        %v579 = vmax.f32 %v454, 0.0
        %v580 = vmax.f32 %v458, 0.0
        %v581 = vmax.f32 %v460, 0.0
        %v582 = vmax.f32 %v462, 0.0
        %v583 = vmax.f32 %v464, 0.0
        %v584 = vmax.f32 %v468, 0.0
        %v585 = vmax.f32 %v470, 0.0
        %v586 = vmax.f32 %v472, 0.0
        %v587 = vmax.f32 %v474, 0.0
        %v588 = vmax.f32 %v478, 0.0
        %v589 = vmax.f32 %v480, 0.0
        %v590 = vmax.f32 %v482, 0.0
        %v591 = vmax.f32 %v484, 0.0
        %v592 = vmax.f32 %v488, 0.0
        %v593 = vmax.f32 %v490, 0.0
        %v594 = vmax.f32 %v492, 0.0
        %v595 = vmax.f32 %v494, 0.0
        %v596 = vmax.f32 %v498, 0.0
        %v597 = vmax.f32 %v500, 0.0
        %v598 = vmax.f32 %v502, 0.0
        %v599 = vmax.f32 %v504, 0.0
        %v600 = vmax.f32 %v508, 0.0
        %v601 = vmax.f32 %v510, 0.0
        %v602 = vmax.f32 %v512, 0.0
        %v603 = vmax.f32 %v514, 0.0
        %v604 = vmax.f32 %v518, 0.0
        %v605 = vmax.f32 %v520, 0.0
        %v606 = vmax.f32 %v522, 0.0
        %v607 = vmax.f32 %v524, 0.0
        %v608 = vmax.f32 %v528, 0.0
        %v609 = vmax.f32 %v530, 0.0
        %v610 = vmax.f32 %v532, 0.0
        %v611 = vmax.f32 %v534, 0.0
        %v612 = vmax.f32 %v538, 0.0
        %v613 = vmax.f32 %v540, 0.0
        %v614 = vmax.f32 %v542, 0.0
        %v615 = vmax.f32 %v544, 0.0
        %v616 = vmax.f32 %v548, 0.0
        %v617 = vmax.f32 %v550, 0.0
        %v618 = vmax.f32 %v552, 0.0
        %v619 = vmax.f32 %v554, 0.0
        %620 = vst [vmem:[%s203] sm:$0xff] %v556
        %621 = vst [vmem:[%s203 + $0x8] sm:$0xff] %v557
        %622 = vst [vmem:[%s203 + $0x10] sm:$0xff] %v558
        %623 = vst [vmem:[%s203 + $0x18] sm:$0xff] %v559
        %624 = vst [vmem:[%s203 + $0x20] sm:$0xff] %v560
        %625 = vst [vmem:[%s203 + $0x28] sm:$0xff] %v561
        %626 = vst [vmem:[%s203 + $0x30] sm:$0xff] %v562
        %627 = vst [vmem:[%s203 + $0x38] sm:$0xff] %v563
        %628 = vst [vmem:[%s203 + $0x40] sm:$0xff] %v564
        %629 = vst [vmem:[%s203 + $0x48] sm:$0xff] %v565
        %630 = vst [vmem:[%s203 + $0x50] sm:$0xff] %v566
        %631 = vst [vmem:[%s203 + $0x58] sm:$0xff] %v567
        %632 = vst [vmem:[%s203 + $0x60] sm:$0xff] %v568
        %633 = vst [vmem:[%s203 + $0x68] sm:$0xff] %v569
        %634 = vst [vmem:[%s203 + $0x70] sm:$0xff] %v570
        %635 = vst [vmem:[%s203 + $0x78] sm:$0xff] %v571
        %636 = vst [vmem:[%s203 + $0x80] sm:$0xff] %v572
        %637 = vst [vmem:[%s203 + $0x88] sm:$0xff] %v573
        %638 = vst [vmem:[%s203 + $0x90] sm:$0xff] %v574
        %639 = vst [vmem:[%s203 + $0x98] sm:$0xff] %v575
        %640 = vst [vmem:[%s203 + $0xa0] sm:$0xff] %v576
        %641 = vst [vmem:[%s203 + $0xa8] sm:$0xff] %v577
        %642 = vst [vmem:[%s203 + $0xb0] sm:$0xff] %v578
        %643 = vst [vmem:[%s203 + $0xb8] sm:$0xff] %v579
        %644 = vst [vmem:[%s203 + $0xc0] sm:$0xff] %v580
        %645 = vst [vmem:[%s203 + $0xc8] sm:$0xff] %v581
        %646 = vst [vmem:[%s203 + $0xd0] sm:$0xff] %v582
        %647 = vst [vmem:[%s203 + $0xd8] sm:$0xff] %v583
        %648 = vst [vmem:[%s203 + $0xe0] sm:$0xff] %v584
        %649 = vst [vmem:[%s203 + $0xe8] sm:$0xff] %v585
        %650 = vst [vmem:[%s203 + $0xf0] sm:$0xff] %v586
        %651 = vst [vmem:[%s203 + $0xf8] sm:$0xff] %v587
        %652 = vst [vmem:[%s203 + $0x100] sm:$0xff] %v588
        %653 = vst [vmem:[%s203 + $0x108] sm:$0xff] %v589
        %654 = vst [vmem:[%s203 + $0x110] sm:$0xff] %v590
        %655 = vst [vmem:[%s203 + $0x118] sm:$0xff] %v591
        %656 = vst [vmem:[%s203 + $0x120] sm:$0xff] %v592
        %657 = vst [vmem:[%s203 + $0x128] sm:$0xff] %v593
        %658 = vst [vmem:[%s203 + $0x130] sm:$0xff] %v594
        %659 = vst [vmem:[%s203 + $0x138] sm:$0xff] %v595
        %660 = vst [vmem:[%s203 + $0x140] sm:$0xff] %v596
        %661 = vst [vmem:[%s203 + $0x148] sm:$0xff] %v597
        %662 = vst [vmem:[%s203 + $0x150] sm:$0xff] %v598
        %663 = vst [vmem:[%s203 + $0x158] sm:$0xff] %v599
        %664 = vst [vmem:[%s203 + $0x160] sm:$0xff] %v600
        %665 = vst [vmem:[%s203 + $0x168] sm:$0xff] %v601
        %666 = vst [vmem:[%s203 + $0x170] sm:$0xff] %v602
        %667 = vst [vmem:[%s203 + $0x178] sm:$0xff] %v603
        %668 = vst [vmem:[%s203 + $0x180] sm:$0xff] %v604
        %669 = vst [vmem:[%s203 + $0x188] sm:$0xff] %v605
        %670 = vst [vmem:[%s203 + $0x190] sm:$0xff] %v606
        %671 = vst [vmem:[%s203 + $0x198] sm:$0xff] %v607
        %672 = vst [vmem:[%s203 + $0x1a0] sm:$0xff] %v608
        %673 = vst [vmem:[%s203 + $0x1a8] sm:$0xff] %v609
        %674 = vst [vmem:[%s203 + $0x1b0] sm:$0xff] %v610
        %675 = vst [vmem:[%s203 + $0x1b8] sm:$0xff] %v611
        %676 = vst [vmem:[%s203 + $0x1c0] sm:$0xff] %v612
        %677 = vst [vmem:[%s203 + $0x1c8] sm:$0xff] %v613
        %678 = vst [vmem:[%s203 + $0x1d0] sm:$0xff] %v614
        %679 = vst [vmem:[%s203 + $0x1d8] sm:$0xff] %v615
        %680 = vst [vmem:[%s203 + $0x1e0] sm:$0xff] %v616
        %681 = vst [vmem:[%s203 + $0x1e8] sm:$0xff] %v617
        %682 = vst [vmem:[%s203 + $0x1f0] sm:$0xff] %v618
        %683 = vst [vmem:[%s203 + $0x1f8] sm:$0xff] %v619
        %s684 = sand.u32 %s97, 1
        %s685 = scalar_lea.sflag [#allocation4], %s684
        %s686 = sand.u32 %s97, 1
        %s687 = smul.addr %s686, 512
        %s688 = scalar_lea.vmem [#allocation7], %s687
        // Predicated region
        $region41: #{tpu_custom_call.1} parent=31 // pred_check
          %p689 = pneg %p107
        $region42: #{tpu_custom_call.1} parent=31 // pred_check_branch
          %691 = sbr.rel (%p689) target = $region44
        $region43: #{tpu_custom_call.1} parent=31 // pred_region
          %s692 = smul.u32 32, %s21
          %s694 = ssub.s32 8192, 8192
          %695 = vsyncadd %s685, %s694
          %s696 = smul.addr %s692, 2
          %s697 = smul.addr %s696, 128
          %s698 = scalar_lea.hbm %s3, %s697
          %s699 = sshll.u32 %s688, 4
          %s700 = int_to_ptr.vmem [resolvable:$true] %s699
          %705 = dma.vmem_to_hbm [thread:$0]  %s700, 8192, %s698, %s685, 256, 256, 16
        $region44: #{tpu_custom_call.1} parent=31 // pred_fallthru
          _
      $region32: #{tpu_custom_call.1} parent=5 // pred_fallthru
        _
      %p706 = scmp.le.s32.totalorder 2, %s16
      // Predicated region
      $region45: #{tpu_custom_call.1} parent=5 // pred_check
        %p707 = pneg %p706
      $region46: #{tpu_custom_call.1} parent=5 // pred_check_branch
        %709 = sbr.rel (%p707) target = $region48
      $region47: #{tpu_custom_call.1} parent=5 // pred_region
        %s710 = ssub.s32 %s16, 2
        // Predicated region
        $region49: #{tpu_custom_call.1} parent=47 // pred_check
          %p711 = pneg %p113
        $region50: #{tpu_custom_call.1} parent=47 // pred_check_branch
          %713 = sbr.rel (%p711) target = $region52
        $region51: #{tpu_custom_call.1} parent=47 // pred_region
          %s714 = sand.u32 %s98, 1
          %s715 = scalar_lea.sflag [#allocation4], %s714
          %s716 = sand.u32 %s98, 1
          %s717 = smul.addr %s716, 512
          %s718 = scalar_lea.vmem [#allocation7], %s717
          %719 = dma.done %s715, 8192
        $region52: #{tpu_custom_call.1} parent=47 // pred_fallthru
          _
      $region48: #{tpu_custom_call.1} parent=5 // pred_fallthru
        _
    $region6: #{tpu_custom_call.1} parent=1 // loop_footer
      %s20 = sadd.s32 1, %s16
    $region7: #{tpu_custom_call.1} parent=1 // loop_footer_branch
      %15 = sbr.rel target = $region3
    $region8: #{tpu_custom_call.1} parent=1 // loop_exit
      _
    %720 = vsyncpa [#allocation3], 1
    %s721 = scalar_lea.sflag [#allocation3], 1
    %722 = vsyncpa %s721, 1
    %723 = vsyncpa [#allocation6], 1
    %724 = vsyncpa [#allocation4], 1
    %s725 = scalar_lea.sflag [#allocation4], 1
    %726 = vsyncpa %s725, 1

</llo_original>
